<compile_context>
chip_gen: v7x
topology: tpu7x:2x2x1
jax: 0.10.0
libtpu: 0.0.40
codegen_flags: <defaults>
</compile_context>

<pallas_src>
import jax
import jax.numpy as jnp
from jax.experimental import pallas as pl
from jax.experimental.pallas import tpu as pltpu


# --------------------------------------------------------------------------- budgets

def _vmem_budgets():
    """Generation-aware (vmem_limit_bytes, streamed-block budget, resident-weight budget)."""
    try:
        cap = int(pltpu.get_tpu_info().vmem_capacity_bytes)
    except Exception:
        cap = 64 * 1024 * 1024            # conservative fallback (v7x has 64 MiB / core)
    vmem_limit = min((cap * 3) // 4, 96 * 1024 * 1024)     # ~96 MiB v5e/v6e, ~48 MiB v7x
    block_budget = min(8 * 1024 * 1024, vmem_limit // 6)   # per streamed x block (2x buffered)
    w_resident_budget = min(8 * 1024 * 1024, vmem_limit // 6)
    return vmem_limit, block_budget, w_resident_budget


def _pick_batch_tile(B, cap=128):
    """Largest multiple-of-8 divisor of B that is <= cap (or B itself); prefer >=2 batch
    tiles when B allows so the parallel axis can shard across v7x's 2 TensorCores."""
    best = B
    for t in range(min(cap, B), 7, -1):
        if B % t == 0 and t % 8 == 0:
            best = t
            break
    if best == B and B >= 16:
        for t in range(B // 2, 7, -1):
            if B % t == 0 and t % 8 == 0:
                return t
    return best


def _pick_k_tile(K, bytes_per_k, budget):
    """Largest lane-aligned (multiple of 128) divisor of K whose streamed block fits the
    budget; falls back to the full K (always a legal block)."""
    cap = budget // max(bytes_per_k, 1)
    if K <= cap:
        return K
    t = (min(cap, K) // 128) * 128
    while t >= 128:
        if K % t == 0:
            return t
        t -= 128
    return K


def _patchify(x, patch):
    """NCHW [B, C, H, W] -> [B, N, C*P*P].  Used by the pure-JAX reference only."""
    B, C, H, W = x.shape
    P = patch
    Hg, Wg = H // P, W // P
    x = x.reshape(B, C, Hg, P, Wg, P)
    x = jnp.transpose(x, (0, 2, 4, 1, 3, 5))
    return x.reshape(B, Hg * Wg, C * P * P)


# --------------------------------------------------------------------------- kernel

def _make_fused_kernel(w_resident, tk):
    """One fused kernel: K-blocked matmul (extractor pool+proj (+) adaptor linear, all
    folded into the weight) with f32 accumulation, then bias + ReLU + classifier matmul."""

    def kernel(x_ref, w_ref, bea_ref, cw_ref, cb_ref, out_ref, acc_ref):
        k = pl.program_id(1)                              # reduction step over K tiles

        @pl.when(k == 0)
        def _init():
            acc_ref[...] = jnp.zeros_like(acc_ref)

        if w_resident:
            # Whole fused weight is VMEM-resident; take the K-slice for this step.
            start = pl.multiple_of(k * tk, tk)
            w_blk = w_ref[pl.ds(start, tk), :]
        else:
            w_blk = w_ref[...]                            # streamed (TK, A) block

        acc_ref[...] += jnp.dot(x_ref[...], w_blk,
                                preferred_element_type=jnp.float32)      # [TB, A]

        @pl.when(k == pl.num_programs(1) - 1)
        def _finalize():
            adapted = jnp.maximum(acc_ref[...] + bea_ref[...], 0.0)      # adaptor ReLU
            out_ref[...] = (jnp.dot(adapted, cw_ref[...],
                                    preferred_element_type=jnp.float32)
                            + cb_ref[...]).astype(out_ref.dtype)         # classifier

    return kernel


# --------------------------------------------------------------------------- modules

class PatchEmbedExtractor:
    """Deterministic stand-in for the external image feature extractor."""

    def __init__(self, key, in_channels=4, patch=8, hidden=32):
        self.patch = patch
        self.in_channels = in_channels
        self.hidden = hidden
        self.dp = in_channels * patch * patch
        k1, k2 = jax.random.split(key)
        self.w = (jax.random.normal(k1, (self.dp, hidden), jnp.float32)
                  / jnp.sqrt(self.dp)).astype(jnp.float32)
        self.b = (jax.random.normal(k2, (1, hidden), jnp.float32) * 0.01)


class LinearReLUAdaptor:
    def __init__(self, key, in_dim=32, out_dim=64):
        k1, k2 = jax.random.split(key)
        self.w = (jax.random.normal(k1, (in_dim, out_dim), jnp.float32)
                  / jnp.sqrt(in_dim)).astype(jnp.float32)
        self.b = (jax.random.normal(k2, (1, out_dim), jnp.float32) * 0.01)


class LinearClassifier:
    def __init__(self, key, in_dim=64, num_classes=8):
        k1, k2 = jax.random.split(key)
        self.w = (jax.random.normal(k1, (in_dim, num_classes), jnp.float32)
                  / jnp.sqrt(in_dim)).astype(jnp.float32)
        self.b = (jax.random.normal(k2, (1, num_classes), jnp.float32) * 0.01)


class FullModel:
    """JAX/Pallas port: classifier(adaptor(extractor(x))) fused into ONE kernel."""

    def __init__(self, extractor, adaptor, classifier):
        self.extractor = extractor
        self.adaptor = adaptor
        self.classifier = classifier

    # pure-JAX reference of the *unfused* forward (per-patch projection, then mean)
    def reference(self, x):
        patches = _patchify(x.astype(jnp.float32), self.extractor.patch)      # [B, N, Dp]
        per_patch = jnp.einsum('bnp,pd->bnd', patches, self.extractor.w) + self.extractor.b
        features = per_patch.mean(axis=1)                                     # [B, D]
        adapted = jnp.maximum(features @ self.adaptor.w + self.adaptor.b, 0.0)
        return adapted @ self.classifier.w + self.classifier.b                # [B, K]

    def _fused_weights(self, H, W):
        """Fold mean-pooling + extractor projection + adaptor linear into one (C*H*W, A)
        weight (valid only because the stand-ins are linear up to the adaptor ReLU)."""
        ext, ad = self.extractor, self.adaptor
        C, P = ext.in_channels, ext.patch
        Hg, Wg = H // P, W // P
        N = Hg * Wg
        A = ad.w.shape[1]
        w_ea = (ext.w @ ad.w) / float(N)                    # (C*P*P, A), 1/N folded in
        w4 = w_ea.reshape(C, P, P, A)                       # (c, ph, pw, a)
        w_full = jnp.broadcast_to(
            w4[:, None, :, None, :, :], (C, Hg, P, Wg, P, A)).reshape(C * H * W, A)
        b_ea = ext.b @ ad.w + ad.b                          # (1, A)
        return w_full, b_ea

    def __call__(self, x, tile_b=None, tile_k=None, w_resident_budget=None):
        B, C, H, W = x.shape
        P = self.extractor.patch
        if C != self.extractor.in_channels:
            raise ValueError("channel mismatch with extractor")
        if H % P != 0 or W % P != 0:
            raise ValueError("spatial dims must be multiples of the patch size")
        A = self.adaptor.w.shape[1]
        Kc = self.classifier.w.shape[1]
        K = C * H * W

        vmem_limit, block_budget, w_budget_default = _vmem_budgets()
        if w_resident_budget is None:
            w_resident_budget = w_budget_default

        w_full, b_ea = self._fused_weights(H, W)
        cw, cb = self.classifier.w, self.classifier.b

        # Free, metadata-only flatten: x is streamed from HBM exactly once, no patchify copy.
        xf = x.reshape(B, K)
        x_item = jnp.dtype(xf.dtype).itemsize
        w_item = jnp.dtype(w_full.dtype).itemsize

        TB = tile_b if tile_b is not None else _pick_batch_tile(B)
        if B % TB != 0 or not (TB == B or TB % 8 == 0):
            raise ValueError(f"tile_b={TB} must divide B={B} and be a multiple of 8 (or == B)")

        w_resident = (K * A * w_item) <= w_resident_budget
        bytes_per_k = TB * x_item + (0 if w_resident else A * w_item)
        TK = tile_k if tile_k is not None else _pick_k_tile(K, bytes_per_k, block_budget)
        if K % TK != 0 or not (TK == K or TK % 128 == 0):
            raise ValueError(f"tile_k={TK} must divide K={K} and be a multiple of 128 (or == K)")

        grid = (B // TB, K // TK)
        const2 = lambda i, k: (0, 0)
        if w_resident:
            w_spec = pl.BlockSpec((K, A), const2)                 # DMA'd once, VMEM-resident
        else:
            w_spec = pl.BlockSpec((TK, A), lambda i, k: (k, 0))   # streamed along K

        kernel = _make_fused_kernel(w_resident, TK)

        flops = 2 * B * K * A + 2 * B * A * Kc
        w_bytes = K * A * w_item * (1 if w_resident else (B // TB))
        bytes_accessed = B * K * x_item + w_bytes + B * Kc * 4

        out = pl.pallas_call(
            kernel,
            out_shape=jax.ShapeDtypeStruct((B, Kc), jnp.float32),
            grid_spec=pltpu.PrefetchScalarGridSpec(
                num_scalar_prefetch=0,
                grid=grid,
                in_specs=[
                    pl.BlockSpec((TB, TK), lambda i, k: (i, k)),  # streamed x tile
                    w_spec,                                       # fused extractor∘adaptor weight
                    pl.BlockSpec((1, A), const2),                 # fused bias
                    pl.BlockSpec((A, Kc), const2),                # classifier W
                    pl.BlockSpec((1, Kc), const2),                # classifier b
                ],
                out_specs=pl.BlockSpec((TB, Kc), lambda i, k: (i, 0)),
                scratch_shapes=[pltpu.VMEM((TB, A), jnp.float32)],   # f32 feature accumulator
            ),
            compiler_params=pltpu.CompilerParams(
                dimension_semantics=("parallel", "arbitrary"),
                vmem_limit_bytes=vmem_limit,
            ),
            cost_estimate=pl.CostEstimate(
                flops=flops, transcendentals=0, bytes_accessed=bytes_accessed),
        )(xf, w_full, b_ea, cw, cb)
        return out


# --------------------------------------------------------------------------- demo / test

if __name__ == "__main__":
    key = jax.random.PRNGKey(0)
    kx, ke, ka, kc = jax.random.split(key, 4)

    extractor = PatchEmbedExtractor(ke, in_channels=4, patch=8, hidden=32)
    adaptor = LinearReLUAdaptor(ka, in_dim=32, out_dim=64)
    classifier = LinearClassifier(kc, in_dim=64, num_classes=8)
    model = FullModel(extractor, adaptor, classifier)

    # Small shapes implied by the module: batch=2, channels=4, spatial=16  (K = 1024).
    x = jax.random.normal(kx, (2, 4, 16, 16), jnp.float32)
    out = jax.block_until_ready(model(x))
    ref = model.reference(x)
    assert out.shape == (2, 8), out.shape
    assert jnp.allclose(out, ref, atol=5e-4, rtol=5e-4), (out, ref)

    # Larger shape: 2 batch tiles (parallel / megacore axis) and a 4-step K reduction,
    # exercising the init/accumulate/finalize path with the VMEM-resident fused weight.
    x2 = jax.random.normal(jax.random.PRNGKey(1), (16, 4, 64, 64), jnp.float32)
    out2 = jax.block_until_ready(model(x2, tile_b=8, tile_k=4096))
    ref2 = model.reference(x2)
    assert out2.shape == (16, 8), out2.shape
    assert jnp.allclose(out2, ref2, atol=5e-4, rtol=5e-4), (out2, ref2)

    # Same shape, forcing the K-streamed weight path (covers the non-resident BlockSpec).
    out3 = jax.block_until_ready(model(x2, tile_b=8, tile_k=4096, w_resident_budget=0))
    assert jnp.allclose(out3, ref2, atol=5e-4, rtol=5e-4), (out3, ref2)

    print("KERNEL_OK")
</pallas_src>

<mosaic_0001>
module attributes {stable_mosaic.version = 11 : i64} {
  func.func @kernel(%arg0: i32, %arg1: i32, %arg2: memref<2x1024xf32, #tpu.memory_space<vmem>>, %arg3: memref<1024x64xf32, #tpu.memory_space<vmem>>, %arg4: memref<1x64xf32, #tpu.memory_space<vmem>>, %arg5: memref<64x8xf32, #tpu.memory_space<vmem>>, %arg6: memref<1x8xf32, #tpu.memory_space<vmem>>, %arg7: memref<2x8xf32, #tpu.memory_space<vmem>>, %arg8: memref<2x64xf32, #tpu.memory_space<vmem>>) attributes {dimension_semantics = [#tpu.dimension_semantics<parallel>, #tpu.dimension_semantics<arbitrary>], iteration_bounds = array<i64: 1, 1>, scalar_prefetch = 0 : i64, scratch_operands = 1 : i64, tpu.core_type = #tpu.core_type<tc>, window_params = [{transform_indices = @transform_0, window_bounds = array<i64: 2, 1024>}, {pipeline_mode = #tpu.pipeline_mode<synchronous>, transform_indices = @transform_1, window_bounds = array<i64: 1024, 64>}, {pipeline_mode = #tpu.pipeline_mode<synchronous>, transform_indices = @transform_2, window_bounds = array<i64: 1, 64>}, {pipeline_mode = #tpu.pipeline_mode<synchronous>, transform_indices = @transform_3, window_bounds = array<i64: 64, 8>}, {pipeline_mode = #tpu.pipeline_mode<synchronous>, transform_indices = @transform_4, window_bounds = array<i64: 1, 8>}, {transform_indices = @transform_5, window_bounds = array<i64: 2, 8>}]} {
    %c0_i32 = arith.constant 0 : i32
    %0 = arith.cmpi eq, %arg1, %c0_i32 : i32
    %1 = arith.extui %0 : i1 to i32
    %c0_i32_0 = arith.constant 0 : i32
    %2 = arith.cmpi ne, %1, %c0_i32_0 : i32
    scf.if %2 {
      %cst_9 = arith.constant 0.000000e+00 : f32
      %15 = vector.broadcast %cst_9 : f32 to vector<2x64xf32>
      %c0_10 = arith.constant 0 : index
      %c0_11 = arith.constant 0 : index
      %16 = vector.load %arg8[%c0_10, %c0_11] : memref<2x64xf32, #tpu.memory_space<vmem>>, vector<2x64xf32>
      tpu.vector_store %arg8[%c0_10, %c0_11], %15 {strides = array<i32>} : memref<2x64xf32, #tpu.memory_space<vmem>>, vector<2x64xf32>,
    } else {
    }
    %c1024_i32 = arith.constant 1024 : i32
    %3 = arith.muli %arg1, %c1024_i32 : i32
    %4 = tpu.assume_multiple %3, 1024 : i32
    %5 = arith.index_cast %4 : i32 to index
    %c0 = arith.constant 0 : index
    %6 = vector.load %arg3[%5, %c0] : memref<1024x64xf32, #tpu.memory_space<vmem>>, vector<1024x64xf32>
    %c0_1 = arith.constant 0 : index
    %c0_2 = arith.constant 0 : index
    %7 = vector.load %arg8[%c0_1, %c0_2] : memref<2x64xf32, #tpu.memory_space<vmem>>, vector<2x64xf32>
    %c0_3 = arith.constant 0 : index
    %c0_4 = arith.constant 0 : index
    %8 = vector.load %arg2[%c0_3, %c0_4] : memref<2x1024xf32, #tpu.memory_space<vmem>>, vector<2x1024xf32>
    %cst = arith.constant dense<0.000000e+00> : vector<2x64xf32>
    %9 = tpu.matmul %8, %6, %cst {dimension_numbers = #tpu.dot_dimension_numbers<[1], [0], [0], [1], [0, 0, 1, 1], [], []>} : vector<2x1024xf32>, vector<1024x64xf32>, vector<2x64xf32> -> vector<2x64xf32>
    %10 = arith.addf %7, %9 : vector<2x64xf32>
    %c0_5 = arith.constant 0 : index
    %c0_6 = arith.constant 0 : index
    %11 = vector.load %arg8[%c0_5, %c0_6] : memref<2x64xf32, #tpu.memory_space<vmem>>, vector<2x64xf32>
    tpu.vector_store %arg8[%c0_5, %c0_6], %10 {strides = array<i32>} : memref<2x64xf32, #tpu.memory_space<vmem>>, vector<2x64xf32>,
    %c0_i32_7 = arith.constant 0 : i32
    %12 = arith.cmpi eq, %arg1, %c0_i32_7 : i32
    %13 = arith.extui %12 : i1 to i32
    %c0_i32_8 = arith.constant 0 : i32
    %14 = arith.cmpi ne, %13, %c0_i32_8 : i32
    scf.if %14 {
      %c0_9 = arith.constant 0 : index
      %c0_10 = arith.constant 0 : index
      %15 = vector.load %arg8[%c0_9, %c0_10] : memref<2x64xf32, #tpu.memory_space<vmem>>, vector<2x64xf32>
      %c0_11 = arith.constant 0 : index
      %c0_12 = arith.constant 0 : index
      %16 = vector.load %arg4[%c0_11, %c0_12] : memref<1x64xf32, #tpu.memory_space<vmem>>, vector<1x64xf32>
      %17 = vector.broadcast %16 : vector<1x64xf32> to vector<2x64xf32>
      %18 = arith.addf %15, %17 : vector<2x64xf32>
      %cst_13 = arith.constant 0.000000e+00 : f32
      %19 = vector.broadcast %cst_13 : f32 to vector<2x64xf32>
      %20 = arith.maximumf %18, %19 : vector<2x64xf32>
      %c0_14 = arith.constant 0 : index
      %c0_15 = arith.constant 0 : index
      %21 = vector.load %arg5[%c0_14, %c0_15] : memref<64x8xf32, #tpu.memory_space<vmem>>, vector<64x8xf32>
      %cst_16 = arith.constant dense<0.000000e+00> : vector<2x8xf32>
      %22 = tpu.matmul %20, %21, %cst_16 {dimension_numbers = #tpu.dot_dimension_numbers<[1], [0], [0], [1], [0, 0, 1, 1], [], []>} : vector<2x64xf32>, vector<64x8xf32>, vector<2x8xf32> -> vector<2x8xf32>
      %c0_17 = arith.constant 0 : index
      %c0_18 = arith.constant 0 : index
      %23 = vector.load %arg6[%c0_17, %c0_18] : memref<1x8xf32, #tpu.memory_space<vmem>>, vector<1x8xf32>
      %24 = vector.broadcast %23 : vector<1x8xf32> to vector<2x8xf32>
      %25 = arith.addf %22, %24 : vector<2x8xf32>
      %c0_19 = arith.constant 0 : index
      %c0_20 = arith.constant 0 : index
      %26 = vector.load %arg7[%c0_19, %c0_20] : memref<2x8xf32, #tpu.memory_space<vmem>>, vector<2x8xf32>
      tpu.vector_store %arg7[%c0_19, %c0_20], %25 {strides = array<i32>} : memref<2x8xf32, #tpu.memory_space<vmem>>, vector<2x8xf32>,
    } else {
    }
    return
  }
  func.func @transform_0(%arg0: i32, %arg1: i32) -> (i32, i32) {
    %c0_i32 = arith.constant 0 : i32
    return %arg0, %arg1 : i32, i32
  }
  func.func @transform_1(%arg0: i32, %arg1: i32) -> (i32, i32) {
    %c0_i32 = arith.constant 0 : i32
    %c0_i32_0 = arith.constant 0 : i32
    %c0_i32_1 = arith.constant 0 : i32
    return %c0_i32, %c0_i32_0 : i32, i32
  }
  func.func @transform_2(%arg0: i32, %arg1: i32) -> (i32, i32) {
    %c0_i32 = arith.constant 0 : i32
    %c0_i32_0 = arith.constant 0 : i32
    %c0_i32_1 = arith.constant 0 : i32
    return %c0_i32, %c0_i32_0 : i32, i32
  }
  func.func @transform_3(%arg0: i32, %arg1: i32) -> (i32, i32) {
    %c0_i32 = arith.constant 0 : i32
    %c0_i32_0 = arith.constant 0 : i32
    %c0_i32_1 = arith.constant 0 : i32
    return %c0_i32, %c0_i32_0 : i32, i32
  }
  func.func @transform_4(%arg0: i32, %arg1: i32) -> (i32, i32) {
    %c0_i32 = arith.constant 0 : i32
    %c0_i32_0 = arith.constant 0 : i32
    %c0_i32_1 = arith.constant 0 : i32
    return %c0_i32, %c0_i32_0 : i32, i32
  }
  func.func @transform_5(%arg0: i32, %arg1: i32) -> (i32, i32) {
    %c0_i32 = arith.constant 0 : i32
    %c0_i32_0 = arith.constant 0 : i32
    return %arg0, %c0_i32 : i32, i32
  }
}

</mosaic_0001>

<llo_original>
// kernel: tpu_custom_call.1
$region0: #{tpu_custom_call.1}
  #allocation0 [shape = 'u32[]', space=smem, size = 0x4, offset = 0x4, fixed_abs, tag = 'smem constant byte address 0x4 - core index']
  #allocation1 [shape = 'u32[144,128]{1,0:T(1,128)}', space=vmem, size = 0x12000, scoped, tag = 'internal scratch']
  #allocation2 [shape = 'f32[2,64]{1,0:T(2,128)}', space=vmem, size = 0x400, scoped, tag = 'scratch operand']
  %s0 = inlined_call_operand.vmem [shape: f32[2,1024], index: 0, kind: input, shape index: {}]
  %s1 = inlined_call_operand.vmem [shape: f32[1024,64], index: 1, kind: input, shape index: {}]
  %s2 = inlined_call_operand.vmem [shape: f32[1,64], index: 2, kind: input, shape index: {}]
  %s3 = inlined_call_operand.vmem [shape: f32[64,8], index: 3, kind: input, shape index: {}]
  %s4 = inlined_call_operand.vmem [shape: f32[1,8], index: 4, kind: input, shape index: {}]
  %s5 = inlined_call_operand.hbm [shape: f32[2,8], index: 5, kind: output, shape index: {}]
  %s6 = sld [smem:[#allocation0]]
  $region38: #{tpu_custom_call.1} parent=0
    _
  %s8 = ssub.s32 1, %s6
  %s9 = scalar_select 0, %s8, %s6
  $region1: #{tpu_custom_call.1} parent=0
    #allocation3 [shape = 'u8[1024]{0}', space=vmem, size = 0x400, scoped, tag = 'output window, operand 0, single buffered']
    #allocation4 [shape = 's32[1]{0}', space=sflag, size = 0x4, scoped, tag = 'scoped memory for tpu_custom_call.1']
    %10 = vsyncpa [#allocation4], 0
    // Predicated region
    $region2: #{tpu_custom_call.1} parent=1 // pred_check
      _
    $region3: #{tpu_custom_call.1} parent=1 // pred_check_branch
      %12 = sbr.rel (0) target = $region5
    $region4: #{tpu_custom_call.1} parent=1 // pred_region
      _
    $region5: #{tpu_custom_call.1} parent=1 // pred_fallthru
      _
    // Predicated region
    $region6: #{tpu_custom_call.1} parent=1 // pred_check
      _
    $region7: #{tpu_custom_call.1} parent=1 // pred_check_branch
      %14 = sbr.rel (0) target = $region9
    $region8: #{tpu_custom_call.1} parent=1 // pred_region
      _
    $region9: #{tpu_custom_call.1} parent=1 // pred_fallthru
      _
    // Predicated region
    $region10: #{tpu_custom_call.1} parent=1 // pred_check
      _
    $region11: #{tpu_custom_call.1} parent=1 // pred_check_branch
      %16 = sbr.rel (0) target = $region13
    $region12: #{tpu_custom_call.1} parent=1 // pred_region
      _
    $region13: #{tpu_custom_call.1} parent=1 // pred_fallthru
      _
    // Predicated region
    $region14: #{tpu_custom_call.1} parent=1 // pred_check
      _
    $region15: #{tpu_custom_call.1} parent=1 // pred_check_branch
      %18 = sbr.rel (0) target = $region17
    $region16: #{tpu_custom_call.1} parent=1 // pred_region
      _
    $region17: #{tpu_custom_call.1} parent=1 // pred_fallthru
      _
    // Predicated region
    $region18: #{tpu_custom_call.1} parent=1 // pred_check
      _
    $region19: #{tpu_custom_call.1} parent=1 // pred_check_branch
      %20 = sbr.rel (0) target = $region21
    $region20: #{tpu_custom_call.1} parent=1 // pred_region
      _
    $region21: #{tpu_custom_call.1} parent=1 // pred_fallthru
      _
    %p21 = scmp.eq.s32.totalorder 0, 0
    // Predicated region
    $region22: #{tpu_custom_call.1} parent=1 // pred_check
      %p22 = pneg %p21
    $region23: #{tpu_custom_call.1} parent=1 // pred_check_branch
      %24 = sbr.rel (%p22) target = $region25
    $region24: #{tpu_custom_call.1} parent=1 // pred_region
      %vm25 = vcmask 517120
      %26 = vst.msk [vmem:[#allocation2] sm:$0x3] %vm25, 0.0
    $region25: #{tpu_custom_call.1} parent=1 // pred_fallthru
      _
    %s27 = smul.u32 0, 1024
    %s28 = scalar_lea.vmem %s1, %s27
    %v29 = vld [vmem:[%s28] sm:$0xff]
    %v30 = vld [vmem:[%s28 + $0x8] sm:$0xff]
    %v31 = vld [vmem:[%s28 + $0x10] sm:$0xff]
    %v32 = vld [vmem:[%s28 + $0x18] sm:$0xff]
    %v33 = vld [vmem:[%s28 + $0x20] sm:$0xff]
    %v34 = vld [vmem:[%s28 + $0x28] sm:$0xff]
    %v35 = vld [vmem:[%s28 + $0x30] sm:$0xff]
    %v36 = vld [vmem:[%s28 + $0x38] sm:$0xff]
    %v37 = vld [vmem:[%s28 + $0x40] sm:$0xff]
    %v38 = vld [vmem:[%s28 + $0x48] sm:$0xff]
    %v39 = vld [vmem:[%s28 + $0x50] sm:$0xff]
    %v40 = vld [vmem:[%s28 + $0x58] sm:$0xff]
    %v41 = vld [vmem:[%s28 + $0x60] sm:$0xff]
    %v42 = vld [vmem:[%s28 + $0x68] sm:$0xff]
    %v43 = vld [vmem:[%s28 + $0x70] sm:$0xff]
    %v44 = vld [vmem:[%s28 + $0x78] sm:$0xff]
    %v45 = vld [vmem:[%s28 + $0x80] sm:$0xff]
    %v46 = vld [vmem:[%s28 + $0x88] sm:$0xff]
    %v47 = vld [vmem:[%s28 + $0x90] sm:$0xff]
    %v48 = vld [vmem:[%s28 + $0x98] sm:$0xff]
    %v49 = vld [vmem:[%s28 + $0xa0] sm:$0xff]
    %v50 = vld [vmem:[%s28 + $0xa8] sm:$0xff]
    %v51 = vld [vmem:[%s28 + $0xb0] sm:$0xff]
    %v52 = vld [vmem:[%s28 + $0xb8] sm:$0xff]
    %v53 = vld [vmem:[%s28 + $0xc0] sm:$0xff]
    %v54 = vld [vmem:[%s28 + $0xc8] sm:$0xff]
    %v55 = vld [vmem:[%s28 + $0xd0] sm:$0xff]
    %v56 = vld [vmem:[%s28 + $0xd8] sm:$0xff]
    %v57 = vld [vmem:[%s28 + $0xe0] sm:$0xff]
    %v58 = vld [vmem:[%s28 + $0xe8] sm:$0xff]
    %v59 = vld [vmem:[%s28 + $0xf0] sm:$0xff]
    %v60 = vld [vmem:[%s28 + $0xf8] sm:$0xff]
    %v61 = vld [vmem:[%s28 + $0x100] sm:$0xff]
    %v62 = vld [vmem:[%s28 + $0x108] sm:$0xff]
    %v63 = vld [vmem:[%s28 + $0x110] sm:$0xff]
    %v64 = vld [vmem:[%s28 + $0x118] sm:$0xff]
    %v65 = vld [vmem:[%s28 + $0x120] sm:$0xff]
    %v66 = vld [vmem:[%s28 + $0x128] sm:$0xff]
    %v67 = vld [vmem:[%s28 + $0x130] sm:$0xff]
    %v68 = vld [vmem:[%s28 + $0x138] sm:$0xff]
    %v69 = vld [vmem:[%s28 + $0x140] sm:$0xff]
    %v70 = vld [vmem:[%s28 + $0x148] sm:$0xff]
    %v71 = vld [vmem:[%s28 + $0x150] sm:$0xff]
    %v72 = vld [vmem:[%s28 + $0x158] sm:$0xff]
    %v73 = vld [vmem:[%s28 + $0x160] sm:$0xff]
    %v74 = vld [vmem:[%s28 + $0x168] sm:$0xff]
    %v75 = vld [vmem:[%s28 + $0x170] sm:$0xff]
    %v76 = vld [vmem:[%s28 + $0x178] sm:$0xff]
    %v77 = vld [vmem:[%s28 + $0x180] sm:$0xff]
    %v78 = vld [vmem:[%s28 + $0x188] sm:$0xff]
    %v79 = vld [vmem:[%s28 + $0x190] sm:$0xff]
    %v80 = vld [vmem:[%s28 + $0x198] sm:$0xff]
    %v81 = vld [vmem:[%s28 + $0x1a0] sm:$0xff]
    %v82 = vld [vmem:[%s28 + $0x1a8] sm:$0xff]
    %v83 = vld [vmem:[%s28 + $0x1b0] sm:$0xff]
    %v84 = vld [vmem:[%s28 + $0x1b8] sm:$0xff]
    %v85 = vld [vmem:[%s28 + $0x1c0] sm:$0xff]
    %v86 = vld [vmem:[%s28 + $0x1c8] sm:$0xff]
    %v87 = vld [vmem:[%s28 + $0x1d0] sm:$0xff]
    %v88 = vld [vmem:[%s28 + $0x1d8] sm:$0xff]
    %v89 = vld [vmem:[%s28 + $0x1e0] sm:$0xff]
    %v90 = vld [vmem:[%s28 + $0x1e8] sm:$0xff]
    %v91 = vld [vmem:[%s28 + $0x1f0] sm:$0xff]
    %v92 = vld [vmem:[%s28 + $0x1f8] sm:$0xff]
    %v93 = vld [vmem:[%s28 + $0x200] sm:$0xff]
    %v94 = vld [vmem:[%s28 + $0x208] sm:$0xff]
    %v95 = vld [vmem:[%s28 + $0x210] sm:$0xff]
    %v96 = vld [vmem:[%s28 + $0x218] sm:$0xff]
    %v97 = vld [vmem:[%s28 + $0x220] sm:$0xff]
    %v98 = vld [vmem:[%s28 + $0x228] sm:$0xff]
    %v99 = vld [vmem:[%s28 + $0x230] sm:$0xff]
    %v100 = vld [vmem:[%s28 + $0x238] sm:$0xff]
    %v101 = vld [vmem:[%s28 + $0x240] sm:$0xff]
    %v102 = vld [vmem:[%s28 + $0x248] sm:$0xff]
    %v103 = vld [vmem:[%s28 + $0x250] sm:$0xff]
    %v104 = vld [vmem:[%s28 + $0x258] sm:$0xff]
    %v105 = vld [vmem:[%s28 + $0x260] sm:$0xff]
    %v106 = vld [vmem:[%s28 + $0x268] sm:$0xff]
    %v107 = vld [vmem:[%s28 + $0x270] sm:$0xff]
    %v108 = vld [vmem:[%s28 + $0x278] sm:$0xff]
    %v109 = vld [vmem:[%s28 + $0x280] sm:$0xff]
    %v110 = vld [vmem:[%s28 + $0x288] sm:$0xff]
    %v111 = vld [vmem:[%s28 + $0x290] sm:$0xff]
    %v112 = vld [vmem:[%s28 + $0x298] sm:$0xff]
    %v113 = vld [vmem:[%s28 + $0x2a0] sm:$0xff]
    %v114 = vld [vmem:[%s28 + $0x2a8] sm:$0xff]
    %v115 = vld [vmem:[%s28 + $0x2b0] sm:$0xff]
    %v116 = vld [vmem:[%s28 + $0x2b8] sm:$0xff]
    %v117 = vld [vmem:[%s28 + $0x2c0] sm:$0xff]
    %v118 = vld [vmem:[%s28 + $0x2c8] sm:$0xff]
    %v119 = vld [vmem:[%s28 + $0x2d0] sm:$0xff]
    %v120 = vld [vmem:[%s28 + $0x2d8] sm:$0xff]
    %v121 = vld [vmem:[%s28 + $0x2e0] sm:$0xff]
    %v122 = vld [vmem:[%s28 + $0x2e8] sm:$0xff]
    %v123 = vld [vmem:[%s28 + $0x2f0] sm:$0xff]
    %v124 = vld [vmem:[%s28 + $0x2f8] sm:$0xff]
    %v125 = vld [vmem:[%s28 + $0x300] sm:$0xff]
    %v126 = vld [vmem:[%s28 + $0x308] sm:$0xff]
    %v127 = vld [vmem:[%s28 + $0x310] sm:$0xff]
    %v128 = vld [vmem:[%s28 + $0x318] sm:$0xff]
    %v129 = vld [vmem:[%s28 + $0x320] sm:$0xff]
    %v130 = vld [vmem:[%s28 + $0x328] sm:$0xff]
    %v131 = vld [vmem:[%s28 + $0x330] sm:$0xff]
    %v132 = vld [vmem:[%s28 + $0x338] sm:$0xff]
    %v133 = vld [vmem:[%s28 + $0x340] sm:$0xff]
    %v134 = vld [vmem:[%s28 + $0x348] sm:$0xff]
    %v135 = vld [vmem:[%s28 + $0x350] sm:$0xff]
    %v136 = vld [vmem:[%s28 + $0x358] sm:$0xff]
    %v137 = vld [vmem:[%s28 + $0x360] sm:$0xff]
    %v138 = vld [vmem:[%s28 + $0x368] sm:$0xff]
    %v139 = vld [vmem:[%s28 + $0x370] sm:$0xff]
    %v140 = vld [vmem:[%s28 + $0x378] sm:$0xff]
    %v141 = vld [vmem:[%s28 + $0x380] sm:$0xff]
    %v142 = vld [vmem:[%s28 + $0x388] sm:$0xff]
    %v143 = vld [vmem:[%s28 + $0x390] sm:$0xff]
    %v144 = vld [vmem:[%s28 + $0x398] sm:$0xff]
    %v145 = vld [vmem:[%s28 + $0x3a0] sm:$0xff]
    %v146 = vld [vmem:[%s28 + $0x3a8] sm:$0xff]
    %v147 = vld [vmem:[%s28 + $0x3b0] sm:$0xff]
    %v148 = vld [vmem:[%s28 + $0x3b8] sm:$0xff]
    %v149 = vld [vmem:[%s28 + $0x3c0] sm:$0xff]
    %v150 = vld [vmem:[%s28 + $0x3c8] sm:$0xff]
    %v151 = vld [vmem:[%s28 + $0x3d0] sm:$0xff]
    %v152 = vld [vmem:[%s28 + $0x3d8] sm:$0xff]
    %v153 = vld [vmem:[%s28 + $0x3e0] sm:$0xff]
    %v154 = vld [vmem:[%s28 + $0x3e8] sm:$0xff]
    %v155 = vld [vmem:[%s28 + $0x3f0] sm:$0xff]
    %v156 = vld [vmem:[%s28 + $0x3f8] sm:$0xff]
    %v157 = vld [vmem:[#allocation2] sm:$0x3]
    %v158 = vld [vmem:[%s0] sm:$0xff]
    %v159 = vld [vmem:[%s0 + $0x8] sm:$0xff]
    %v162 = vcombine.high %v158, %v158
    %v164 = vunpack.c.l.s4 1983009808
    %v165 = vunpack.c.0.s8 %v164
    %v166 = vlaneseq
    %v167 = vshrl.u32 %v166, 7
    %v168 = vsub.s32 %v165, %v167
    %v169 = vrot.slane %v158, %v168
    %v171 = vunpack.c.l.s4 1983009808
    %v172 = vunpack.c.0.s8 %v171
    %v173 = vlaneseq
    %v174 = vshrl.u32 %v173, 7
    %v175 = vsub.s32 %v172, %v174
    %v176 = vrot.slane %v162, %v175
    %v177 = vcombine.high %v169, %v169
    %v178 = vcombine.high %v176, %v176
    %v179 = vcombine.high %v159, %v159
    %v181 = vunpack.c.l.s4 1983009808
    %v182 = vunpack.c.0.s8 %v181
    %v183 = vlaneseq
    %v184 = vshrl.u32 %v183, 7
    %v185 = vsub.s32 %v182, %v184
    %v186 = vrot.slane %v159, %v185
    %v188 = vunpack.c.l.s4 1983009808
    %v189 = vunpack.c.0.s8 %v188
    %v190 = vlaneseq
    %v191 = vshrl.u32 %v190, 7
    %v192 = vsub.s32 %v189, %v191
    %v193 = vrot.slane %v179, %v192
    %v194 = vcombine.high %v186, %v186
    %v195 = vcombine.high %v193, %v193
    %204 = vmatprep.subr.mxu0 0.0
    %205 = vmatpush1.msra.mxu0 %v29
    %206 = vmatprep.subr.mxu0 0.0
    %207 = vmatpush1.msra.mxu0 %v30
    %208 = vmatprep.subr.mxu0 0.0
    %209 = vmatpush1.msra.mxu0 %v31
    %210 = vmatprep.subr.mxu0 0.0
    %211 = vmatpush1.msra.mxu0 %v32
    %212 = vmatprep.subr.mxu0 0.0
    %213 = vmatpush1.msra.mxu0 %v33
    %214 = vmatprep.subr.mxu0 0.0
    %215 = vmatpush1.msra.mxu0 %v34
    %216 = vmatprep.subr.mxu0 0.0
    %217 = vmatpush1.msra.mxu0 %v35
    %218 = vmatprep.subr.mxu0 0.0
    %219 = vmatpush1.msra.mxu0 %v36
    %220 = vmatprep.subr.mxu0 0.0
    %221 = vmatpush1.msra.mxu0 %v37
    %222 = vmatprep.subr.mxu0 0.0
    %223 = vmatpush1.msra.mxu0 %v38
    %224 = vmatprep.subr.mxu0 0.0
    %225 = vmatpush1.msra.mxu0 %v39
    %226 = vmatprep.subr.mxu0 0.0
    %227 = vmatpush1.msra.mxu0 %v40
    %228 = vmatprep.subr.mxu0 0.0
    %229 = vmatpush1.msra.mxu0 %v41
    %230 = vmatprep.subr.mxu0 0.0
    %231 = vmatpush1.msra.mxu0 %v42
    %232 = vmatprep.subr.mxu0 0.0
    %233 = vmatpush1.msra.mxu0 %v43
    %234 = vmatprep.subr.mxu0 0.0
    %235 = vmatpush1.msra.mxu0 %v44
    %236 = vmatprep.subr.mxu0 0.0
    %237 = vmatpush1.msra.mxu0 %v45
    %238 = vmatprep.subr.mxu0 0.0
    %239 = vmatpush1.msra.mxu0 %v46
    %240 = vmatprep.subr.mxu0 0.0
    %241 = vmatpush1.msra.mxu0 %v47
    %242 = vmatprep.subr.mxu0 0.0
    %243 = vmatpush1.msra.mxu0 %v48
    %244 = vmatprep.subr.mxu0 0.0
    %245 = vmatpush1.msra.mxu0 %v49
    %246 = vmatprep.subr.mxu0 0.0
    %247 = vmatpush1.msra.mxu0 %v50
    %248 = vmatprep.subr.mxu0 0.0
    %249 = vmatpush1.msra.mxu0 %v51
    %250 = vmatprep.subr.mxu0 0.0
    %251 = vmatpush1.msra.mxu0 %v52
    %252 = vmatprep.subr.mxu0 0.0
    %253 = vmatpush1.msra.mxu0 %v53
    %254 = vmatprep.subr.mxu0 0.0
    %255 = vmatpush1.msra.mxu0 %v54
    %256 = vmatprep.subr.mxu0 0.0
    %257 = vmatpush1.msra.mxu0 %v55
    %258 = vmatprep.subr.mxu0 0.0
    %259 = vmatpush1.msra.mxu0 %v56
    %260 = vmatprep.subr.mxu0 0.0
    %261 = vmatpush1.msra.mxu0 %v57
    %262 = vmatprep.subr.mxu0 0.0
    %263 = vmatpush1.msra.mxu0 %v58
    %264 = vmatprep.subr.mxu0 0.0
    %265 = vmatpush1.msra.mxu0 %v59
    %266 = vmatprep.subr.mxu0 0.0
    %267 = vmatpush1.msra.mxu0 %v60
    %268 = vmatprep.mubr.f32.mxu0 %v177
    %269 = vmatmul.mubr.f32.gmra.mrb[0].mxu0 %v169
    %v270 = vpop.f32.mrb[0].mxu0
    %v271 = vadd.f32 0.0, %v270
    %v272 = vpop.f32.mrb[0].mxu0
    %273 = vdwg.mxu0
    %274 = vmatprep.subr.mxu0 0.0
    %275 = vmatpush1.msra.mxu0 %v61
    %276 = vmatprep.subr.mxu0 0.0
    %277 = vmatpush1.msra.mxu0 %v62
    %278 = vmatprep.subr.mxu0 0.0
    %279 = vmatpush1.msra.mxu0 %v63
    %280 = vmatprep.subr.mxu0 0.0
    %281 = vmatpush1.msra.mxu0 %v64
    %282 = vmatprep.subr.mxu0 0.0
    %283 = vmatpush1.msra.mxu0 %v65
    %284 = vmatprep.subr.mxu0 0.0
    %285 = vmatpush1.msra.mxu0 %v66
    %286 = vmatprep.subr.mxu0 0.0
    %287 = vmatpush1.msra.mxu0 %v67
    %288 = vmatprep.subr.mxu0 0.0
    %289 = vmatpush1.msra.mxu0 %v68
    %290 = vmatprep.subr.mxu0 0.0
    %291 = vmatpush1.msra.mxu0 %v69
    %292 = vmatprep.subr.mxu0 0.0
    %293 = vmatpush1.msra.mxu0 %v70
    %294 = vmatprep.subr.mxu0 0.0
    %295 = vmatpush1.msra.mxu0 %v71
    %296 = vmatprep.subr.mxu0 0.0
    %297 = vmatpush1.msra.mxu0 %v72
    %298 = vmatprep.subr.mxu0 0.0
    %299 = vmatpush1.msra.mxu0 %v73
    %300 = vmatprep.subr.mxu0 0.0
    %301 = vmatpush1.msra.mxu0 %v74
    %302 = vmatprep.subr.mxu0 0.0
    %303 = vmatpush1.msra.mxu0 %v75
    %304 = vmatprep.subr.mxu0 0.0
    %305 = vmatpush1.msra.mxu0 %v76
    %306 = vmatprep.subr.mxu0 0.0
    %307 = vmatpush1.msra.mxu0 %v77
    %308 = vmatprep.subr.mxu0 0.0
    %309 = vmatpush1.msra.mxu0 %v78
    %310 = vmatprep.subr.mxu0 0.0
    %311 = vmatpush1.msra.mxu0 %v79
    %312 = vmatprep.subr.mxu0 0.0
    %313 = vmatpush1.msra.mxu0 %v80
    %314 = vmatprep.subr.mxu0 0.0
    %315 = vmatpush1.msra.mxu0 %v81
    %316 = vmatprep.subr.mxu0 0.0
    %317 = vmatpush1.msra.mxu0 %v82
    %318 = vmatprep.subr.mxu0 0.0
    %319 = vmatpush1.msra.mxu0 %v83
    %320 = vmatprep.subr.mxu0 0.0
    %321 = vmatpush1.msra.mxu0 %v84
    %322 = vmatprep.subr.mxu0 0.0
    %323 = vmatpush1.msra.mxu0 %v85
    %324 = vmatprep.subr.mxu0 0.0
    %325 = vmatpush1.msra.mxu0 %v86
    %326 = vmatprep.subr.mxu0 0.0
    %327 = vmatpush1.msra.mxu0 %v87
    %328 = vmatprep.subr.mxu0 0.0
    %329 = vmatpush1.msra.mxu0 %v88
    %330 = vmatprep.subr.mxu0 0.0
    %331 = vmatpush1.msra.mxu0 %v89
    %332 = vmatprep.subr.mxu0 0.0
    %333 = vmatpush1.msra.mxu0 %v90
    %334 = vmatprep.subr.mxu0 0.0
    %335 = vmatpush1.msra.mxu0 %v91
    %336 = vmatprep.subr.mxu0 0.0
    %337 = vmatpush1.msra.mxu0 %v92
    %338 = vmatprep.mubr.f32.mxu0 %v178
    %339 = vmatmul.mubr.f32.gmra.mrb[0].mxu0 %v176
    %v340 = vpop.f32.mrb[0].mxu0
    %v341 = vadd.f32 %v271, %v340
    %v342 = vpop.f32.mrb[0].mxu0
    %343 = vdwg.mxu0
    %344 = vmatprep.subr.mxu0 0.0
    %345 = vmatpush1.msra.mxu0 %v93
    %346 = vmatprep.subr.mxu0 0.0
    %347 = vmatpush1.msra.mxu0 %v94
    %348 = vmatprep.subr.mxu0 0.0
    %349 = vmatpush1.msra.mxu0 %v95
    %350 = vmatprep.subr.mxu0 0.0
    %351 = vmatpush1.msra.mxu0 %v96
    %352 = vmatprep.subr.mxu0 0.0
    %353 = vmatpush1.msra.mxu0 %v97
    %354 = vmatprep.subr.mxu0 0.0
    %355 = vmatpush1.msra.mxu0 %v98
    %356 = vmatprep.subr.mxu0 0.0
    %357 = vmatpush1.msra.mxu0 %v99
    %358 = vmatprep.subr.mxu0 0.0
    %359 = vmatpush1.msra.mxu0 %v100
    %360 = vmatprep.subr.mxu0 0.0
    %361 = vmatpush1.msra.mxu0 %v101
    %362 = vmatprep.subr.mxu0 0.0
    %363 = vmatpush1.msra.mxu0 %v102
    %364 = vmatprep.subr.mxu0 0.0
    %365 = vmatpush1.msra.mxu0 %v103
    %366 = vmatprep.subr.mxu0 0.0
    %367 = vmatpush1.msra.mxu0 %v104
    %368 = vmatprep.subr.mxu0 0.0
    %369 = vmatpush1.msra.mxu0 %v105
    %370 = vmatprep.subr.mxu0 0.0
    %371 = vmatpush1.msra.mxu0 %v106
    %372 = vmatprep.subr.mxu0 0.0
    %373 = vmatpush1.msra.mxu0 %v107
    %374 = vmatprep.subr.mxu0 0.0
    %375 = vmatpush1.msra.mxu0 %v108
    %376 = vmatprep.subr.mxu0 0.0
    %377 = vmatpush1.msra.mxu0 %v109
    %378 = vmatprep.subr.mxu0 0.0
    %379 = vmatpush1.msra.mxu0 %v110
    %380 = vmatprep.subr.mxu0 0.0
    %381 = vmatpush1.msra.mxu0 %v111
    %382 = vmatprep.subr.mxu0 0.0
    %383 = vmatpush1.msra.mxu0 %v112
    %384 = vmatprep.subr.mxu0 0.0
    %385 = vmatpush1.msra.mxu0 %v113
    %386 = vmatprep.subr.mxu0 0.0
    %387 = vmatpush1.msra.mxu0 %v114
    %388 = vmatprep.subr.mxu0 0.0
    %389 = vmatpush1.msra.mxu0 %v115
    %390 = vmatprep.subr.mxu0 0.0
    %391 = vmatpush1.msra.mxu0 %v116
    %392 = vmatprep.subr.mxu0 0.0
    %393 = vmatpush1.msra.mxu0 %v117
    %394 = vmatprep.subr.mxu0 0.0
    %395 = vmatpush1.msra.mxu0 %v118
    %396 = vmatprep.subr.mxu0 0.0
    %397 = vmatpush1.msra.mxu0 %v119
    %398 = vmatprep.subr.mxu0 0.0
    %399 = vmatpush1.msra.mxu0 %v120
    %400 = vmatprep.subr.mxu0 0.0
    %401 = vmatpush1.msra.mxu0 %v121
    %402 = vmatprep.subr.mxu0 0.0
    %403 = vmatpush1.msra.mxu0 %v122
    %404 = vmatprep.subr.mxu0 0.0
    %405 = vmatpush1.msra.mxu0 %v123
    %406 = vmatprep.subr.mxu0 0.0
    %407 = vmatpush1.msra.mxu0 %v124
    %408 = vmatprep.mubr.f32.mxu0 %v194
    %409 = vmatmul.mubr.f32.gmra.mrb[0].mxu0 %v186
    %v410 = vpop.f32.mrb[0].mxu0
    %v411 = vadd.f32 %v341, %v410
    %v412 = vpop.f32.mrb[0].mxu0
    %413 = vdwg.mxu0
    %414 = vmatprep.subr.mxu0 0.0
    %415 = vmatpush1.msra.mxu0 %v125
    %416 = vmatprep.subr.mxu0 0.0
    %417 = vmatpush1.msra.mxu0 %v126
    %418 = vmatprep.subr.mxu0 0.0
    %419 = vmatpush1.msra.mxu0 %v127
    %420 = vmatprep.subr.mxu0 0.0
    %421 = vmatpush1.msra.mxu0 %v128
    %422 = vmatprep.subr.mxu0 0.0
    %423 = vmatpush1.msra.mxu0 %v129
    %424 = vmatprep.subr.mxu0 0.0
    %425 = vmatpush1.msra.mxu0 %v130
    %426 = vmatprep.subr.mxu0 0.0
    %427 = vmatpush1.msra.mxu0 %v131
    %428 = vmatprep.subr.mxu0 0.0
    %429 = vmatpush1.msra.mxu0 %v132
    %430 = vmatprep.subr.mxu0 0.0
    %431 = vmatpush1.msra.mxu0 %v133
    %432 = vmatprep.subr.mxu0 0.0
    %433 = vmatpush1.msra.mxu0 %v134
    %434 = vmatprep.subr.mxu0 0.0
    %435 = vmatpush1.msra.mxu0 %v135
    %436 = vmatprep.subr.mxu0 0.0
    %437 = vmatpush1.msra.mxu0 %v136
    %438 = vmatprep.subr.mxu0 0.0
    %439 = vmatpush1.msra.mxu0 %v137
    %440 = vmatprep.subr.mxu0 0.0
    %441 = vmatpush1.msra.mxu0 %v138
    %442 = vmatprep.subr.mxu0 0.0
    %443 = vmatpush1.msra.mxu0 %v139
    %444 = vmatprep.subr.mxu0 0.0
    %445 = vmatpush1.msra.mxu0 %v140
    %446 = vmatprep.subr.mxu0 0.0
    %447 = vmatpush1.msra.mxu0 %v141
    %448 = vmatprep.subr.mxu0 0.0
    %449 = vmatpush1.msra.mxu0 %v142
    %450 = vmatprep.subr.mxu0 0.0
    %451 = vmatpush1.msra.mxu0 %v143
    %452 = vmatprep.subr.mxu0 0.0
    %453 = vmatpush1.msra.mxu0 %v144
    %454 = vmatprep.subr.mxu0 0.0
    %455 = vmatpush1.msra.mxu0 %v145
    %456 = vmatprep.subr.mxu0 0.0
    %457 = vmatpush1.msra.mxu0 %v146
    %458 = vmatprep.subr.mxu0 0.0
    %459 = vmatpush1.msra.mxu0 %v147
    %460 = vmatprep.subr.mxu0 0.0
    %461 = vmatpush1.msra.mxu0 %v148
    %462 = vmatprep.subr.mxu0 0.0
    %463 = vmatpush1.msra.mxu0 %v149
    %464 = vmatprep.subr.mxu0 0.0
    %465 = vmatpush1.msra.mxu0 %v150
    %466 = vmatprep.subr.mxu0 0.0
    %467 = vmatpush1.msra.mxu0 %v151
    %468 = vmatprep.subr.mxu0 0.0
    %469 = vmatpush1.msra.mxu0 %v152
    %470 = vmatprep.subr.mxu0 0.0
    %471 = vmatpush1.msra.mxu0 %v153
    %472 = vmatprep.subr.mxu0 0.0
    %473 = vmatpush1.msra.mxu0 %v154
    %474 = vmatprep.subr.mxu0 0.0
    %475 = vmatpush1.msra.mxu0 %v155
    %476 = vmatprep.subr.mxu0 0.0
    %477 = vmatpush1.msra.mxu0 %v156
    %478 = vmatprep.mubr.f32.mxu0 %v195
    %479 = vmatmul.mubr.f32.gmra.mrb[0].mxu0 %v193
    %v480 = vpop.f32.mrb[0].mxu0
    %v481 = vadd.f32 %v411, %v480
    %v482 = vpop.f32.mrb[0].mxu0
    %483 = vdwg.mxu0
    %v484 = vadd.f32 %v157, %v481
    %vm485 = vcmask 517120
    %486 = vst.msk [vmem:[#allocation2] sm:$0x3] %vm485, %v484
    // Predicated region
    $region26: #{tpu_custom_call.1} parent=1 // pred_check
      %p487 = pneg %p21
    $region27: #{tpu_custom_call.1} parent=1 // pred_check_branch
      %489 = sbr.rel (%p487) target = $region29
    $region28: #{tpu_custom_call.1} parent=1 // pred_region
      %v490 = vld [vmem:[#allocation2] sm:$0x3]
      %v491 = vld [vmem:[%s2] sm:$0x1]
      %v493 = vlaneseq
      %v494 = vshrl.u32 %v493, 7
      %v495 = vsub.s32 0, %v494
      %v496 = vrot.slane %v491, %v495
      %v498 = vadd.f32 %v490, %v496
      %v499 = vmax.f32 %v498, 0.0
      %v500 = vld [vmem:[%s3] sm:$0xff]
      %v501 = vld [vmem:[%s3 + $0x8] sm:$0xff]
      %v502 = vld [vmem:[%s3 + $0x10] sm:$0xff]
      %v503 = vld [vmem:[%s3 + $0x18] sm:$0xff]
      %v504 = vld [vmem:[%s3 + $0x20] sm:$0xff]
      %v505 = vld [vmem:[%s3 + $0x28] sm:$0xff]
      %v506 = vld [vmem:[%s3 + $0x30] sm:$0xff]
      %v507 = vld [vmem:[%s3 + $0x38] sm:$0xff]
      %v508 = vld [vmem:[%s4] sm:$0x1]
      %v510 = vlaneseq
      %v511 = vshrl.u32 %v510, 7
      %v512 = vsub.s32 0, %v511
      %v513 = vrot.slane %v508, %v512
      %vm515 = vcmask 523264
      %v517 = vsel %vm515, %v499, 0
      %519 = vmatprep.subr.mxu0 0.0
      %520 = vmatpush1.msra.mxu0 %v500
      %521 = vmatprep.subr.mxu0 0.0
      %522 = vmatpush1.msra.mxu0 %v501
      %523 = vmatprep.subr.mxu0 0.0
      %524 = vmatpush1.msra.mxu0 %v502
      %525 = vmatprep.subr.mxu0 0.0
      %526 = vmatpush1.msra.mxu0 %v503
      %527 = vmatprep.subr.mxu0 0.0
      %528 = vmatpush1.msra.mxu0 %v504
      %529 = vmatprep.subr.mxu0 0.0
      %530 = vmatpush1.msra.mxu0 %v505
      %531 = vmatprep.subr.mxu0 0.0
      %532 = vmatpush1.msra.mxu0 %v506
      %533 = vmatprep.subr.mxu0 0.0
      %534 = vmatpush1.msra.mxu0 %v507
      %535 = vmatprep.subr.mxu0 0.0
      %536 = vmatpush1.msra.mxu0 0.0
      %537 = vmatprep.subr.mxu0 0.0
      %538 = vmatpush1.msra.mxu0 0.0
      %539 = vmatprep.subr.mxu0 0.0
      %540 = vmatpush1.msra.mxu0 0.0
      %541 = vmatprep.subr.mxu0 0.0
      %542 = vmatpush1.msra.mxu0 0.0
      %543 = vmatprep.subr.mxu0 0.0
      %544 = vmatpush1.msra.mxu0 0.0
      %545 = vmatprep.subr.mxu0 0.0
      %546 = vmatpush1.msra.mxu0 0.0
      %547 = vmatprep.subr.mxu0 0.0
      %548 = vmatpush1.msra.mxu0 0.0
      %549 = vmatprep.subr.mxu0 0.0
      %550 = vmatpush1.msra.mxu0 0.0
      %551 = vmatprep.subr.mxu0 0.0
      %552 = vmatpush1.msra.mxu0 0.0
      %553 = vmatprep.subr.mxu0 0.0
      %554 = vmatpush1.msra.mxu0 0.0
      %555 = vmatprep.subr.mxu0 0.0
      %556 = vmatpush1.msra.mxu0 0.0
      %557 = vmatprep.subr.mxu0 0.0
      %558 = vmatpush1.msra.mxu0 0.0
      %559 = vmatprep.subr.mxu0 0.0
      %560 = vmatpush1.msra.mxu0 0.0
      %561 = vmatprep.subr.mxu0 0.0
      %562 = vmatpush1.msra.mxu0 0.0
      %563 = vmatprep.subr.mxu0 0.0
      %564 = vmatpush1.msra.mxu0 0.0
      %565 = vmatprep.subr.mxu0 0.0
      %566 = vmatpush1.msra.mxu0 0.0
      %567 = vmatprep.subr.mxu0 0.0
      %568 = vmatpush1.msra.mxu0 0.0
      %569 = vmatprep.subr.mxu0 0.0
      %570 = vmatpush1.msra.mxu0 0.0
      %571 = vmatprep.subr.mxu0 0.0
      %572 = vmatpush1.msra.mxu0 0.0
      %573 = vmatprep.subr.mxu0 0.0
      %574 = vmatpush1.msra.mxu0 0.0
      %575 = vmatprep.subr.mxu0 0.0
      %576 = vmatpush1.msra.mxu0 0.0
      %577 = vmatprep.subr.mxu0 0.0
      %578 = vmatpush1.msra.mxu0 0.0
      %579 = vmatprep.subr.mxu0 0.0
      %580 = vmatpush1.msra.mxu0 0.0
      %581 = vmatprep.subr.mxu0 0.0
      %582 = vmatpush1.msra.mxu0 0.0
      %583 = vmatprep.mubr.f32.mxu0 0.0
      %584 = vmatmul.mubr.f32.gmra.mrb[0].mxu0 %v517
      %v585 = vpop.f32.mrb[0].mxu0
      %v586 = vadd.f32 %v513, %v585
      %v587 = vpop.f32.mrb[0].mxu0
      %588 = vdwg.mxu0
      %vm589 = vcmask 58368
      %590 = vst.msk [vmem:[#allocation3] sm:$0x3] %vm589, %v586
    $region29: #{tpu_custom_call.1} parent=1 // pred_fallthru
      _
    // Predicated region
    $region30: #{tpu_custom_call.1} parent=1 // pred_check
      _
    $region31: #{tpu_custom_call.1} parent=1 // pred_check_branch
      %592 = sbr.rel (0) target = $region33
    $region32: #{tpu_custom_call.1} parent=1 // pred_region
      %s594 = ssub.s32 32, 32
      %595 = vsyncadd [#allocation4], %s594
      %s597 = sshll.u32 [#allocation3], 4
      %s598 = int_to_ptr.vmem [resolvable:$true] %s597
      %600 = dma.vmem_to_hbm [thread:$0]  %s598, 32, %s5, [#allocation4]
    $region33: #{tpu_custom_call.1} parent=1 // pred_fallthru
      _
    // Predicated region
    $region34: #{tpu_custom_call.1} parent=1 // pred_check
      _
    $region35: #{tpu_custom_call.1} parent=1 // pred_check_branch
      %602 = sbr.rel (0) target = $region37
    $region36: #{tpu_custom_call.1} parent=1 // pred_region
      %603 = dma.done [#allocation4], 32
    $region37: #{tpu_custom_call.1} parent=1 // pred_fallthru
      _
    %604 = vsyncpa [#allocation4], 1

</llo_original>
